<compile_context>
chip_gen: v5e
topology: v5e:2x2
jax: 0.10.0
libtpu: 0.0.40
codegen_flags: <defaults>
</compile_context>

<pallas_src>
import jax
import jax.numpy as jnp
from jax.experimental import pallas as pl
from jax.experimental.pallas import tpu as pltpu


def _round_up(x, m):
    return (x + m - 1) // m * m


def _pick_tiling(m_rows, tm_max=1024):
    """Pick the row-tile size and padded row count.

    Keeps the grid length >= 2 (and even when it has to grow) so the 'parallel'
    axis shards across both v7x TensorCores; caps the tile so per-step VMEM stays
    a few MiB on every generation.
    """
    steps = max(2, pl.cdiv(m_rows, tm_max))
    if steps % 2:
        steps += 1                      # keep both v7x cores balanced
    tm = max(8, _round_up(pl.cdiv(m_rows, steps), 8))
    m_pad = _round_up(m_rows, tm)
    return tm, m_pad


def _extra_head_kernel(p_ref, w1_ref, b1_ref, w2_ref, b2_ref, o_ref, lhs_ref):
    # p_ref  : (TM, K)        bf16  compact im2col patches (K = 9*Cin)
    # w1_ref : (K_pad, Cmid)  bf16  stacked 3x3 weights (rows >= K are zero)
    # b1_ref : (1, Cmid)      f32
    # w2_ref : (Cmid, 128)    bf16  1x1 weights (cols >= Cout are zero)
    # b2_ref : (1, Cout)      f32
    # o_ref  : (TM, Cout)     f32   only the real Cout lanes ever hit HBM
    # lhs_ref: (TM, K_pad)    bf16  VMEM scratch: lane-dense LHS for the MXU
    k = p_ref.shape[1]
    # Zero-fill then overwrite the first K lanes: padded lanes stay exactly zero
    # (w1 pad rows are zero too, but stale VMEM could be NaN/Inf -> must clear).
    lhs_ref[...] = jnp.zeros_like(lhs_ref)
    lhs_ref[:, :k] = p_ref[...]

    h = jnp.dot(lhs_ref[...], w1_ref[...], preferred_element_type=jnp.float32)
    h = jnp.maximum(h + b1_ref[...], 0.0)                       # bias + ReLU in f32

    out = jnp.dot(h.astype(w2_ref.dtype), w2_ref[...],
                  preferred_element_type=jnp.float32)
    o_ref[...] = out[:, :o_ref.shape[1]] + b2_ref[...]          # store real Cout only


def extra_head_forward(x_nchw, w1_oihw, b1, w2_oihw, b2, *, tm_max=1024):
    """Pallas implementation of ExtraHead.forward.

    x_nchw : (N, Cin, H, W) float32
    w1_oihw: (Cmid, Cin, 3, 3), b1: (Cmid,)
    w2_oihw: (Cout, Cmid, 1, 1), b2: (Cout,)
    returns (N, Cout, H, W) float32
    """
    N, Cin, H, W = x_nchw.shape
    Cmid = w1_oihw.shape[0]
    Cout = w2_oihw.shape[0]

    K = 9 * Cin
    K_pad = _round_up(max(K, 128), 128)      # lane-dense contraction dim (MXU)
    N_pad = _round_up(max(Cout, 128), 128)   # MXU RHS width; only Cout lanes stored
    M = N * H * W
    tm, M_pad = _pick_tiling(M, tm_max)

    # ---- wrapper glue: layout + im2col, done in bf16 -------------------------
    x_nhwc = jnp.transpose(x_nchw, (0, 2, 3, 1)).astype(jnp.bfloat16)   # (N,H,W,Cin)
    x_p = jnp.pad(x_nhwc, ((0, 0), (1, 1), (1, 1), (0, 0)))             # SAME pad
    # TODO(synk): move im2col in-kernel (halo'd NHWC blocks) to drop this HBM
    # materialization entirely; kept in the wrapper for lowering robustness.
    taps = [x_p[:, kh:kh + H, kw:kw + W, :]
            for kh in range(3) for kw in range(3)]                      # (kh,kw) major
    patches = jnp.stack(taps, axis=3).reshape(M, K)                     # (M, 9*Cin)
    patches = jnp.pad(patches, ((0, M_pad - M), (0, 0)))                # compact K

    w1_k = jnp.transpose(w1_oihw, (2, 3, 1, 0)).reshape(K, Cmid)        # (9Cin, Cmid)
    w1_k = jnp.pad(w1_k, ((0, K_pad - K), (0, 0))).astype(jnp.bfloat16)
    b1_k = b1.reshape(1, Cmid).astype(jnp.float32)

    w2_k = jnp.transpose(w2_oihw[:, :, 0, 0], (1, 0))                   # (Cmid, Cout)
    w2_k = jnp.pad(w2_k, ((0, 0), (0, N_pad - Cout))).astype(jnp.bfloat16)
    b2_k = b2.reshape(1, Cout).astype(jnp.float32)

    grid = (M_pad // tm,)

    out_flat = pl.pallas_call(
        _extra_head_kernel,
        out_shape=jax.ShapeDtypeStruct((M_pad, Cout), jnp.float32),
        grid_spec=pltpu.PrefetchScalarGridSpec(
            num_scalar_prefetch=0,
            grid=grid,
            in_specs=[
                pl.BlockSpec((tm, K), lambda i: (i, 0)),
                # weights/biases: constant block index -> fetched once, reused
                pl.BlockSpec((K_pad, Cmid), lambda i: (0, 0)),
                pl.BlockSpec((1, Cmid), lambda i: (0, 0)),
                pl.BlockSpec((Cmid, N_pad), lambda i: (0, 0)),
                pl.BlockSpec((1, Cout), lambda i: (0, 0)),
            ],
            out_specs=pl.BlockSpec((tm, Cout), lambda i: (i, 0)),
            scratch_shapes=[pltpu.VMEM((tm, K_pad), jnp.bfloat16)],
        ),
        compiler_params=pltpu.CompilerParams(
            dimension_semantics=("parallel",)),
    )(patches, w1_k, b1_k, w2_k, b2_k)

    # (M, Cout) row-major == flattened NHWC; only pad rows are sliced off.
    out = out_flat[:M].reshape(N, H, W, Cout)
    # Kept to match the PyTorch module's NCHW output; drop if consumer takes NHWC.
    return jnp.transpose(out, (0, 3, 1, 2))


def _reference_forward(x_nchw, w1_oihw, b1, w2_oihw, b2):
    """Pure-JAX reference (lax.conv) for correctness checking."""
    dn = ("NCHW", "OIHW", "NCHW")
    y = jax.lax.conv_general_dilated(x_nchw, w1_oihw, (1, 1), "SAME",
                                     dimension_numbers=dn)
    y = y + b1[None, :, None, None]
    y = jnp.maximum(y, 0.0)
    z = jax.lax.conv_general_dilated(y, w2_oihw, (1, 1), "SAME",
                                     dimension_numbers=dn)
    return z + b2[None, :, None, None]


if __name__ == "__main__":
    # Small shapes consistent with the module: N=2, Cin=4, H=W=16, Cmid=256, Cout=8.
    N, Cin, H, W = 2, 4, 16, 16
    Cmid, Cout = 256, 8

    key = jax.random.PRNGKey(0)
    k_x, k_w1, k_b1, k_w2, k_b2 = jax.random.split(key, 5)

    x = jax.random.normal(k_x, (N, Cin, H, W), dtype=jnp.float32)
    w1 = jax.random.normal(k_w1, (Cmid, Cin, 3, 3), dtype=jnp.float32) * 0.1
    b1 = jax.random.normal(k_b1, (Cmid,), dtype=jnp.float32) * 0.1
    w2 = jax.random.normal(k_w2, (Cout, Cmid, 1, 1), dtype=jnp.float32) * 0.1
    b2 = jax.random.normal(k_b2, (Cout,), dtype=jnp.float32) * 0.1

    out = extra_head_forward(x, w1, b1, w2, b2)
    jax.block_until_ready(out)

    ref = _reference_forward(x, w1, b1, w2, b2)
    jax.block_until_ready(ref)

    assert out.shape == (N, Cout, H, W)
    # Tolerance reflects bf16 matmul operands (f32 accumulation) in the kernel.
    assert jnp.allclose(out, ref, atol=5e-2, rtol=5e-2), (
        float(jnp.max(jnp.abs(out - ref))))

    print("KERNEL_OK")
</pallas_src>

<mosaic_0001>
module attributes {stable_mosaic.version = 11 : i64} {
  func.func @_extra_head_kernel(%arg0: i32, %arg1: memref<256x36xbf16, #tpu.memory_space<vmem>>, %arg2: memref<128x256xbf16, #tpu.memory_space<vmem>>, %arg3: memref<1x256xf32, #tpu.memory_space<vmem>>, %arg4: memref<256x128xbf16, #tpu.memory_space<vmem>>, %arg5: memref<1x8xf32, #tpu.memory_space<vmem>>, %arg6: memref<256x8xf32, #tpu.memory_space<vmem>>, %arg7: memref<256x128xbf16, #tpu.memory_space<vmem>>) attributes {dimension_semantics = [#tpu.dimension_semantics<parallel>], iteration_bounds = array<i64: 2>, scalar_prefetch = 0 : i64, scratch_operands = 1 : i64, tpu.core_type = #tpu.core_type<tc>, window_params = [{transform_indices = @transform_0, window_bounds = array<i64: 256, 36>}, {pipeline_mode = #tpu.pipeline_mode<synchronous>, transform_indices = @transform_1, window_bounds = array<i64: 128, 256>}, {pipeline_mode = #tpu.pipeline_mode<synchronous>, transform_indices = @transform_2, window_bounds = array<i64: 1, 256>}, {pipeline_mode = #tpu.pipeline_mode<synchronous>, transform_indices = @transform_3, window_bounds = array<i64: 256, 128>}, {pipeline_mode = #tpu.pipeline_mode<synchronous>, transform_indices = @transform_4, window_bounds = array<i64: 1, 8>}, {transform_indices = @transform_5, window_bounds = array<i64: 256, 8>}]} {
    %cst = arith.constant 0.000000e+00 : bf16
    %0 = vector.broadcast %cst : bf16 to vector<256x128xbf16>
    %c0 = arith.constant 0 : index
    %c0_0 = arith.constant 0 : index
    %1 = vector.load %arg7[%c0, %c0_0] : memref<256x128xbf16, #tpu.memory_space<vmem>>, vector<256x128xbf16>
    tpu.vector_store %arg7[%c0, %c0_0], %0 {strides = array<i32>} : memref<256x128xbf16, #tpu.memory_space<vmem>>, vector<256x128xbf16>,
    %c0_1 = arith.constant 0 : index
    %c0_2 = arith.constant 0 : index
    %2 = vector.load %arg1[%c0_1, %c0_2] : memref<256x36xbf16, #tpu.memory_space<vmem>>, vector<256x36xbf16>
    %c0_3 = arith.constant 0 : index
    %c0_4 = arith.constant 0 : index
    %3 = vector.load %arg7[%c0_3, %c0_4] : memref<256x128xbf16, #tpu.memory_space<vmem>>, vector<256x36xbf16>
    tpu.vector_store %arg7[%c0_3, %c0_4], %2 {strides = array<i32>} : memref<256x128xbf16, #tpu.memory_space<vmem>>, vector<256x36xbf16>,
    %c0_5 = arith.constant 0 : index
    %c0_6 = arith.constant 0 : index
    %4 = vector.load %arg7[%c0_5, %c0_6] : memref<256x128xbf16, #tpu.memory_space<vmem>>, vector<256x128xbf16>
    %c0_7 = arith.constant 0 : index
    %c0_8 = arith.constant 0 : index
    %5 = vector.load %arg2[%c0_7, %c0_8] : memref<128x256xbf16, #tpu.memory_space<vmem>>, vector<128x256xbf16>
    %cst_9 = arith.constant dense<0.000000e+00> : vector<256x256xf32>
    %6 = tpu.matmul %4, %5, %cst_9 {dimension_numbers = #tpu.dot_dimension_numbers<[1], [0], [0], [1], [0, 0, 1, 1], [], []>} : vector<256x128xbf16>, vector<128x256xbf16>, vector<256x256xf32> -> vector<256x256xf32>
    %c0_10 = arith.constant 0 : index
    %c0_11 = arith.constant 0 : index
    %7 = vector.load %arg3[%c0_10, %c0_11] : memref<1x256xf32, #tpu.memory_space<vmem>>, vector<1x256xf32>
    %8 = vector.broadcast %7 : vector<1x256xf32> to vector<256x256xf32>
    %9 = arith.addf %6, %8 : vector<256x256xf32>
    %cst_12 = arith.constant 0.000000e+00 : f32
    %10 = vector.broadcast %cst_12 : f32 to vector<256x256xf32>
    %11 = arith.maximumf %9, %10 : vector<256x256xf32>
    %12 = arith.truncf %11 : vector<256x256xf32> to vector<256x256xbf16>
    %c0_13 = arith.constant 0 : index
    %c0_14 = arith.constant 0 : index
    %13 = vector.load %arg4[%c0_13, %c0_14] : memref<256x128xbf16, #tpu.memory_space<vmem>>, vector<256x128xbf16>
    %cst_15 = arith.constant dense<0.000000e+00> : vector<256x128xf32>
    %14 = tpu.matmul %12, %13, %cst_15 {dimension_numbers = #tpu.dot_dimension_numbers<[1], [0], [0], [1], [0, 0, 1, 1], [], []>} : vector<256x256xbf16>, vector<256x128xbf16>, vector<256x128xf32> -> vector<256x128xf32>
    %15 = vector.extract_strided_slice %14 {offsets = [0, 0], sizes = [256, 8], strides = [1, 1]} : vector<256x128xf32> to vector<256x8xf32>
    %c0_16 = arith.constant 0 : index
    %c0_17 = arith.constant 0 : index
    %16 = vector.load %arg5[%c0_16, %c0_17] : memref<1x8xf32, #tpu.memory_space<vmem>>, vector<1x8xf32>
    %17 = vector.broadcast %16 : vector<1x8xf32> to vector<256x8xf32>
    %18 = arith.addf %15, %17 : vector<256x8xf32>
    %c0_18 = arith.constant 0 : index
    %c0_19 = arith.constant 0 : index
    %19 = vector.load %arg6[%c0_18, %c0_19] : memref<256x8xf32, #tpu.memory_space<vmem>>, vector<256x8xf32>
    tpu.vector_store %arg6[%c0_18, %c0_19], %18 {strides = array<i32>} : memref<256x8xf32, #tpu.memory_space<vmem>>, vector<256x8xf32>,
    return
  }
  func.func @transform_0(%arg0: i32) -> (i32, i32) {
    %c0_i32 = arith.constant 0 : i32
    %c0_i32_0 = arith.constant 0 : i32
    return %arg0, %c0_i32 : i32, i32
  }
  func.func @transform_1(%arg0: i32) -> (i32, i32) {
    %c0_i32 = arith.constant 0 : i32
    %c0_i32_0 = arith.constant 0 : i32
    %c0_i32_1 = arith.constant 0 : i32
    return %c0_i32, %c0_i32_0 : i32, i32
  }
  func.func @transform_2(%arg0: i32) -> (i32, i32) {
    %c0_i32 = arith.constant 0 : i32
    %c0_i32_0 = arith.constant 0 : i32
    %c0_i32_1 = arith.constant 0 : i32
    return %c0_i32, %c0_i32_0 : i32, i32
  }
  func.func @transform_3(%arg0: i32) -> (i32, i32) {
    %c0_i32 = arith.constant 0 : i32
    %c0_i32_0 = arith.constant 0 : i32
    %c0_i32_1 = arith.constant 0 : i32
    return %c0_i32, %c0_i32_0 : i32, i32
  }
  func.func @transform_4(%arg0: i32) -> (i32, i32) {
    %c0_i32 = arith.constant 0 : i32
    %c0_i32_0 = arith.constant 0 : i32
    %c0_i32_1 = arith.constant 0 : i32
    return %c0_i32, %c0_i32_0 : i32, i32
  }
  func.func @transform_5(%arg0: i32) -> (i32, i32) {
    %c0_i32 = arith.constant 0 : i32
    %c0_i32_0 = arith.constant 0 : i32
    return %arg0, %c0_i32 : i32, i32
  }
}

</mosaic_0001>

<llo_original>
// kernel: tpu_custom_call.1
$region0: #{tpu_custom_call.1}
  #allocation0 [shape = 'u32[]', space=smem, size = 0x4, offset = 0x4, fixed_abs, tag = 'smem constant byte address 0x4 - core index']
  #allocation1 [shape = 'u32[72,128]{1,0:T(1,128)}', space=vmem, size = 0x9000, scoped, tag = 'internal scratch']
  #allocation2 [shape = 'bf16[256,128]{1,0:T(8,128)(2,1)}', space=vmem, size = 0x10000, scoped, tag = 'scratch operand']
  %s0 = inlined_call_operand.vmem [shape: bf16[512,36], index: 0, kind: input, shape index: {}]
  %s1 = inlined_call_operand.vmem [shape: bf16[128,256], index: 1, kind: input, shape index: {}]
  %s2 = inlined_call_operand.vmem [shape: f32[1,256], index: 2, kind: input, shape index: {}]
  %s3 = inlined_call_operand.vmem [shape: bf16[256,128], index: 3, kind: input, shape index: {}]
  %s4 = inlined_call_operand.vmem [shape: f32[1,8], index: 4, kind: input, shape index: {}]
  %s5 = inlined_call_operand.vmem [shape: f32[512,8], index: 5, kind: output, shape index: {}]
  %s6 = sld [smem:[#allocation0]]
  $region53: #{tpu_custom_call.1} parent=0
    _
  %s8 = ssub.s32 1, %s6
  %s9 = scalar_select 0, %s8, %s6
  loop: start=0, step=1, limit=4
  $region2: #{tpu_custom_call.1} parent=0 // loop_pre_header
    _
  $region3: #{tpu_custom_call.1} parent=0 // loop_header
    %s11 = sphi 0, %s15
    %p12 = scmp.ge.s32.totalorder %s11, 4
    %s21 = sphi 0, %s23
    %s24 = sphi 0, %s21
    %s25 = sphi 0, %s24
    %s41 = sphi 0, %s25
    %s45 = sphi 0, %s45
    %s47 = sphi 0, %s45
    %s48 = sphi 0, %s47
    %s62 = sphi 0, %s48
    %s66 = sphi 0, %s66
    %s68 = sphi 0, %s66
    %s69 = sphi 0, %s68
    %s83 = sphi 0, %s69
    %s87 = sphi 0, %s87
    %s89 = sphi 0, %s87
    %s90 = sphi 0, %s89
    %s104 = sphi 0, %s90
    %s108 = sphi 0, %s108
    %s110 = sphi 0, %s108
    %s111 = sphi 0, %s110
    %s125 = sphi 0, %s111
    %s131 = sphi 0, %s133
    %s134 = sphi 0, %s131
    %s135 = sphi 0, %s134
    %s151 = sphi 0, %s135
  $region4: #{tpu_custom_call.1} parent=0 // loop_header_branch
    %14 = sbr.rel (%p12) target = $region8
  $region5: #{tpu_custom_call.1} parent=0 // loop_body
    %s16 = ssub.s32 %s11, 1
    %s17 = ssub.s32 %s11, 2
    %s18 = sadd.s32 %s11, 1
    %s19 = ssub.s32 %s11, %s18
    %p20 = scmp.eq.s32.totalorder %s19, 0
    %s22 = sadd.s32 %s21, 1
    %s23 = scalar_select %p20, %s21, %s22
    %p26 = pneg %p20
    %p27 = scmp.eq.s32.totalorder %s11, 1
    %p28 = por %p26, %p27
    %p29 = scmp.ne.s32.totalorder %s21, %s24
    %p30 = scmp.eq.s32.totalorder %s11, 0
    %p31 = por %p29, %p30
    %p32 = scmp.ne.s32.totalorder %s21, %s24
    %p33 = scmp.eq.s32.totalorder %s16, 1
    %p34 = por %p32, %p33
    %p35 = scmp.ne.s32.totalorder %s24, %s25
    %p36 = scmp.eq.s32.totalorder %s16, 0
    %p37 = por %p35, %p36
    %p38 = scmp.ne.s32.totalorder %s24, %s25
    %p39 = scmp.eq.s32.totalorder %s17, 1
    %p40 = por %p38, %p39
    %p42 = scmp.ne.s32.totalorder %s25, %s41
    %p43 = scmp.eq.s32.totalorder %s17, 0
    %p44 = por %p42, %p43
    %s46 = sadd.s32 %s45, 1
    %p49 = scmp.eq.s32.totalorder %s11, 1
    %p50 = scmp.ne.s32.totalorder %s45, %s47
    %p51 = scmp.eq.s32.totalorder %s11, 0
    %p52 = por %p50, %p51
    %p53 = scmp.ne.s32.totalorder %s45, %s47
    %p54 = scmp.eq.s32.totalorder %s16, 1
    %p55 = por %p53, %p54
    %p56 = scmp.ne.s32.totalorder %s47, %s48
    %p57 = scmp.eq.s32.totalorder %s16, 0
    %p58 = por %p56, %p57
    %p59 = scmp.ne.s32.totalorder %s47, %s48
    %p60 = scmp.eq.s32.totalorder %s17, 1
    %p61 = por %p59, %p60
    %p63 = scmp.ne.s32.totalorder %s48, %s62
    %p64 = scmp.eq.s32.totalorder %s17, 0
    %p65 = por %p63, %p64
    %s67 = sadd.s32 %s66, 1
    %p70 = scmp.eq.s32.totalorder %s11, 1
    %p71 = scmp.ne.s32.totalorder %s66, %s68
    %p72 = scmp.eq.s32.totalorder %s11, 0
    %p73 = por %p71, %p72
    %p74 = scmp.ne.s32.totalorder %s66, %s68
    %p75 = scmp.eq.s32.totalorder %s16, 1
    %p76 = por %p74, %p75
    %p77 = scmp.ne.s32.totalorder %s68, %s69
    %p78 = scmp.eq.s32.totalorder %s16, 0
    %p79 = por %p77, %p78
    %p80 = scmp.ne.s32.totalorder %s68, %s69
    %p81 = scmp.eq.s32.totalorder %s17, 1
    %p82 = por %p80, %p81
    %p84 = scmp.ne.s32.totalorder %s69, %s83
    %p85 = scmp.eq.s32.totalorder %s17, 0
    %p86 = por %p84, %p85
    %s88 = sadd.s32 %s87, 1
    %p91 = scmp.eq.s32.totalorder %s11, 1
    %p92 = scmp.ne.s32.totalorder %s87, %s89
    %p93 = scmp.eq.s32.totalorder %s11, 0
    %p94 = por %p92, %p93
    %p95 = scmp.ne.s32.totalorder %s87, %s89
    %p96 = scmp.eq.s32.totalorder %s16, 1
    %p97 = por %p95, %p96
    %p98 = scmp.ne.s32.totalorder %s89, %s90
    %p99 = scmp.eq.s32.totalorder %s16, 0
    %p100 = por %p98, %p99
    %p101 = scmp.ne.s32.totalorder %s89, %s90
    %p102 = scmp.eq.s32.totalorder %s17, 1
    %p103 = por %p101, %p102
    %p105 = scmp.ne.s32.totalorder %s90, %s104
    %p106 = scmp.eq.s32.totalorder %s17, 0
    %p107 = por %p105, %p106
    %s109 = sadd.s32 %s108, 1
    %p112 = scmp.eq.s32.totalorder %s11, 1
    %p113 = scmp.ne.s32.totalorder %s108, %s110
    %p114 = scmp.eq.s32.totalorder %s11, 0
    %p115 = por %p113, %p114
    %p116 = scmp.ne.s32.totalorder %s108, %s110
    %p117 = scmp.eq.s32.totalorder %s16, 1
    %p118 = por %p116, %p117
    %p119 = scmp.ne.s32.totalorder %s110, %s111
    %p120 = scmp.eq.s32.totalorder %s16, 0
    %p121 = por %p119, %p120
    %p122 = scmp.ne.s32.totalorder %s110, %s111
    %p123 = scmp.eq.s32.totalorder %s17, 1
    %p124 = por %p122, %p123
    %p126 = scmp.ne.s32.totalorder %s111, %s125
    %p127 = scmp.eq.s32.totalorder %s17, 0
    %p128 = por %p126, %p127
    %s129 = ssub.s32 %s11, %s18
    %p130 = scmp.eq.s32.totalorder %s129, 0
    %s132 = sadd.s32 %s131, 1
    %s133 = scalar_select %p130, %s131, %s132
    %p136 = pneg %p130
    %p137 = scmp.eq.s32.totalorder %s11, 1
    %p138 = por %p136, %p137
    %p139 = scmp.ne.s32.totalorder %s131, %s134
    %p140 = scmp.eq.s32.totalorder %s11, 0
    %p141 = por %p139, %p140
    %p142 = scmp.ne.s32.totalorder %s131, %s134
    %p143 = scmp.eq.s32.totalorder %s16, 1
    %p144 = por %p142, %p143
    %p145 = scmp.ne.s32.totalorder %s134, %s135
    %p146 = scmp.eq.s32.totalorder %s16, 0
    %p147 = por %p145, %p146
    %p148 = scmp.ne.s32.totalorder %s134, %s135
    %p149 = scmp.eq.s32.totalorder %s17, 1
    %p150 = por %p148, %p149
    %p152 = scmp.ne.s32.totalorder %s135, %s151
    %p153 = scmp.eq.s32.totalorder %s17, 0
    %p154 = por %p152, %p153
    %p155 = scmp.le.s32.totalorder 1, %s11
    %p156 = scmp.lt.s32.totalorder %s11, 3
    %p157 = pnand %p155, %p156
    %p158 = pneg %p157
    // Predicated region
    $region9: #{tpu_custom_call.1} parent=5 // pred_check
      _
    $region10: #{tpu_custom_call.1} parent=5 // pred_check_branch
      %160 = sbr.rel (%p157) target = $region12
    $region11: #{tpu_custom_call.1} parent=5 // pred_region
      %s161 = ssub.s32 %s11, 1
      // Predicated region
      $region13: #{tpu_custom_call.1} parent=11 // pred_check
        %p162 = pneg %p58
      $region14: #{tpu_custom_call.1} parent=11 // pred_check_branch
        %164 = sbr.rel (%p162) target = $region16
      $region15: #{tpu_custom_call.1} parent=11 // pred_region
        _
      $region16: #{tpu_custom_call.1} parent=11 // pred_fallthru
        _
      // Predicated region
      $region17: #{tpu_custom_call.1} parent=11 // pred_check
        %p165 = pneg %p79
      $region18: #{tpu_custom_call.1} parent=11 // pred_check_branch
        %167 = sbr.rel (%p165) target = $region20
      $region19: #{tpu_custom_call.1} parent=11 // pred_region
        _
      $region20: #{tpu_custom_call.1} parent=11 // pred_fallthru
        _
      // Predicated region
      $region21: #{tpu_custom_call.1} parent=11 // pred_check
        %p168 = pneg %p100
      $region22: #{tpu_custom_call.1} parent=11 // pred_check_branch
        %170 = sbr.rel (%p168) target = $region24
      $region23: #{tpu_custom_call.1} parent=11 // pred_region
        _
      $region24: #{tpu_custom_call.1} parent=11 // pred_fallthru
        _
      // Predicated region
      $region25: #{tpu_custom_call.1} parent=11 // pred_check
        %p171 = pneg %p121
      $region26: #{tpu_custom_call.1} parent=11 // pred_check_branch
        %173 = sbr.rel (%p171) target = $region28
      $region27: #{tpu_custom_call.1} parent=11 // pred_region
        _
      $region28: #{tpu_custom_call.1} parent=11 // pred_fallthru
        _
    $region12: #{tpu_custom_call.1} parent=5 // pred_fallthru
      _
    %p174 = scmp.lt.s32.totalorder %s11, 2
    // Predicated region
    $region29: #{tpu_custom_call.1} parent=5 // pred_check
      %p175 = pneg %p174
    $region30: #{tpu_custom_call.1} parent=5 // pred_check_branch
      %177 = sbr.rel (%p175) target = $region32
    $region31: #{tpu_custom_call.1} parent=5 // pred_region
      // Predicated region
      $region33: #{tpu_custom_call.1} parent=31 // pred_check
        %p178 = pneg %p31
      $region34: #{tpu_custom_call.1} parent=31 // pred_check_branch
        %180 = sbr.rel (%p178) target = $region36
      $region35: #{tpu_custom_call.1} parent=31 // pred_region
        %s181 = smul.u32 32, %s11
        %p182 = scmp.lt.s32.totalorder %s181, 63
        %s183 = scalar_select %p182, %s181, 63
        %s184 = smul.addr %s183, 4
        %s185 = scalar_lea.vmem %s0, %s184
        %s186 = smul.u32 32, %s11
      $region36: #{tpu_custom_call.1} parent=31 // pred_fallthru
        _
    $region32: #{tpu_custom_call.1} parent=5 // pred_fallthru
      _
    %p187 = scmp.le.s32.totalorder 1, %s11
    %p188 = scmp.lt.s32.totalorder %s11, 3
    %p189 = pnand %p187, %p188
    %p190 = pneg %p189
    // Predicated region
    $region37: #{tpu_custom_call.1} parent=5 // pred_check
      _
    $region38: #{tpu_custom_call.1} parent=5 // pred_check_branch
      %192 = sbr.rel (%p189) target = $region40
    $region39: #{tpu_custom_call.1} parent=5 // pred_region
      %s193 = ssub.s32 %s11, 1
      %s194 = smul.u32 32, %s16
      %p195 = scmp.lt.s32.totalorder %s194, 63
      %s196 = scalar_select %p195, %s194, 63
      %s197 = smul.addr %s196, 4
      %s198 = scalar_lea.vmem %s0, %s197
      %p199 = pneg %p37
      %p200 = pneg %p34
      %p201 = pneg %p58
      %p202 = pneg %p55
      %p203 = pneg %p79
      %p204 = pneg %p76
      %p205 = pneg %p100
      %p206 = pneg %p97
      %p207 = pneg %p121
      %p208 = pneg %p118
      %p209 = pneg %p147
      %p210 = pneg %p144
      %s211 = smul.u32 32, %s16
      %p212 = scmp.lt.s32.totalorder %s211, 63
      %s213 = scalar_select %p212, %s211, 63
      %s214 = smul.addr %s213, 8
      %s215 = scalar_lea.vmem %s5, %s214
      %s216 = smul.u32 32, %s16
      %p217 = scmp.lt.s32.totalorder %s216, 63
      %s218 = scalar_select %p217, %s216, 63
      %s219 = smul.addr %s218, 4
      %s220 = scalar_lea.vmem %s0, %s219
      %s221 = smul.u32 32, %s16
      %s222 = smul.u32 32, %s16
      %p223 = scmp.lt.s32.totalorder %s222, 63
      %s224 = scalar_select %p223, %s222, 63
      %s225 = smul.addr %s224, 8
      %s226 = scalar_lea.vmem %s5, %s225
      %s227 = smul.u32 32, %s16
      %229 = vst [vmem:[#allocation2] sm:$0xf] 0
      %230 = vst [vmem:[#allocation2 + $0x4] sm:$0xf] 0
      %231 = vst [vmem:[#allocation2 + $0x8] sm:$0xf] 0
      %232 = vst [vmem:[#allocation2 + $0xc] sm:$0xf] 0
      %233 = vst [vmem:[#allocation2 + $0x10] sm:$0xf] 0
      %234 = vst [vmem:[#allocation2 + $0x14] sm:$0xf] 0
      %235 = vst [vmem:[#allocation2 + $0x18] sm:$0xf] 0
      %236 = vst [vmem:[#allocation2 + $0x1c] sm:$0xf] 0
      %237 = vst [vmem:[#allocation2 + $0x20] sm:$0xf] 0
      %238 = vst [vmem:[#allocation2 + $0x24] sm:$0xf] 0
      %239 = vst [vmem:[#allocation2 + $0x28] sm:$0xf] 0
      %240 = vst [vmem:[#allocation2 + $0x2c] sm:$0xf] 0
      %241 = vst [vmem:[#allocation2 + $0x30] sm:$0xf] 0
      %242 = vst [vmem:[#allocation2 + $0x34] sm:$0xf] 0
      %243 = vst [vmem:[#allocation2 + $0x38] sm:$0xf] 0
      %244 = vst [vmem:[#allocation2 + $0x3c] sm:$0xf] 0
      %245 = vst [vmem:[#allocation2 + $0x40] sm:$0xf] 0
      %246 = vst [vmem:[#allocation2 + $0x44] sm:$0xf] 0
      %247 = vst [vmem:[#allocation2 + $0x48] sm:$0xf] 0
      %248 = vst [vmem:[#allocation2 + $0x4c] sm:$0xf] 0
      %249 = vst [vmem:[#allocation2 + $0x50] sm:$0xf] 0
      %250 = vst [vmem:[#allocation2 + $0x54] sm:$0xf] 0
      %251 = vst [vmem:[#allocation2 + $0x58] sm:$0xf] 0
      %252 = vst [vmem:[#allocation2 + $0x5c] sm:$0xf] 0
      %253 = vst [vmem:[#allocation2 + $0x60] sm:$0xf] 0
      %254 = vst [vmem:[#allocation2 + $0x64] sm:$0xf] 0
      %255 = vst [vmem:[#allocation2 + $0x68] sm:$0xf] 0
      %256 = vst [vmem:[#allocation2 + $0x6c] sm:$0xf] 0
      %257 = vst [vmem:[#allocation2 + $0x70] sm:$0xf] 0
      %258 = vst [vmem:[#allocation2 + $0x74] sm:$0xf] 0
      %259 = vst [vmem:[#allocation2 + $0x78] sm:$0xf] 0
      %260 = vst [vmem:[#allocation2 + $0x7c] sm:$0xf] 0
      %v261 = vld [vmem:[%s220] sm:$0xf]
      %v262 = vld [vmem:[%s220 + $0x4] sm:$0xf]
      %v263 = vld [vmem:[%s220 + $0x8] sm:$0xf]
      %v264 = vld [vmem:[%s220 + $0xc] sm:$0xf]
      %v265 = vld [vmem:[%s220 + $0x10] sm:$0xf]
      %v266 = vld [vmem:[%s220 + $0x14] sm:$0xf]
      %v267 = vld [vmem:[%s220 + $0x18] sm:$0xf]
      %v268 = vld [vmem:[%s220 + $0x1c] sm:$0xf]
      %v269 = vld [vmem:[%s220 + $0x20] sm:$0xf]
      %v270 = vld [vmem:[%s220 + $0x24] sm:$0xf]
      %v271 = vld [vmem:[%s220 + $0x28] sm:$0xf]
      %v272 = vld [vmem:[%s220 + $0x2c] sm:$0xf]
      %v273 = vld [vmem:[%s220 + $0x30] sm:$0xf]
      %v274 = vld [vmem:[%s220 + $0x34] sm:$0xf]
      %v275 = vld [vmem:[%s220 + $0x38] sm:$0xf]
      %v276 = vld [vmem:[%s220 + $0x3c] sm:$0xf]
      %v277 = vld [vmem:[%s220 + $0x40] sm:$0xf]
      %v278 = vld [vmem:[%s220 + $0x44] sm:$0xf]
      %v279 = vld [vmem:[%s220 + $0x48] sm:$0xf]
      %v280 = vld [vmem:[%s220 + $0x4c] sm:$0xf]
      %v281 = vld [vmem:[%s220 + $0x50] sm:$0xf]
      %v282 = vld [vmem:[%s220 + $0x54] sm:$0xf]
      %v283 = vld [vmem:[%s220 + $0x58] sm:$0xf]
      %v284 = vld [vmem:[%s220 + $0x5c] sm:$0xf]
      %v285 = vld [vmem:[%s220 + $0x60] sm:$0xf]
      %v286 = vld [vmem:[%s220 + $0x64] sm:$0xf]
      %v287 = vld [vmem:[%s220 + $0x68] sm:$0xf]
      %v288 = vld [vmem:[%s220 + $0x6c] sm:$0xf]
      %v289 = vld [vmem:[%s220 + $0x70] sm:$0xf]
      %v290 = vld [vmem:[%s220 + $0x74] sm:$0xf]
      %v291 = vld [vmem:[%s220 + $0x78] sm:$0xf]
      %v292 = vld [vmem:[%s220 + $0x7c] sm:$0xf]
      %vm293 = vcmask 289792
      %294 = vst.msk [vmem:[#allocation2] sm:$0xf] %vm293, %v261
      %295 = vst.msk [vmem:[#allocation2 + $0x4] sm:$0xf] %vm293, %v262
      %296 = vst.msk [vmem:[#allocation2 + $0x8] sm:$0xf] %vm293, %v263
      %297 = vst.msk [vmem:[#allocation2 + $0xc] sm:$0xf] %vm293, %v264
      %298 = vst.msk [vmem:[#allocation2 + $0x10] sm:$0xf] %vm293, %v265
      %299 = vst.msk [vmem:[#allocation2 + $0x14] sm:$0xf] %vm293, %v266
      %300 = vst.msk [vmem:[#allocation2 + $0x18] sm:$0xf] %vm293, %v267
      %301 = vst.msk [vmem:[#allocation2 + $0x1c] sm:$0xf] %vm293, %v268
      %302 = vst.msk [vmem:[#allocation2 + $0x20] sm:$0xf] %vm293, %v269
      %303 = vst.msk [vmem:[#allocation2 + $0x24] sm:$0xf] %vm293, %v270
      %304 = vst.msk [vmem:[#allocation2 + $0x28] sm:$0xf] %vm293, %v271
      %305 = vst.msk [vmem:[#allocation2 + $0x2c] sm:$0xf] %vm293, %v272
      %306 = vst.msk [vmem:[#allocation2 + $0x30] sm:$0xf] %vm293, %v273
      %307 = vst.msk [vmem:[#allocation2 + $0x34] sm:$0xf] %vm293, %v274
      %308 = vst.msk [vmem:[#allocation2 + $0x38] sm:$0xf] %vm293, %v275
      %309 = vst.msk [vmem:[#allocation2 + $0x3c] sm:$0xf] %vm293, %v276
      %310 = vst.msk [vmem:[#allocation2 + $0x40] sm:$0xf] %vm293, %v277
      %311 = vst.msk [vmem:[#allocation2 + $0x44] sm:$0xf] %vm293, %v278
      %312 = vst.msk [vmem:[#allocation2 + $0x48] sm:$0xf] %vm293, %v279
      %313 = vst.msk [vmem:[#allocation2 + $0x4c] sm:$0xf] %vm293, %v280
      %314 = vst.msk [vmem:[#allocation2 + $0x50] sm:$0xf] %vm293, %v281
      %315 = vst.msk [vmem:[#allocation2 + $0x54] sm:$0xf] %vm293, %v282
      %316 = vst.msk [vmem:[#allocation2 + $0x58] sm:$0xf] %vm293, %v283
      %317 = vst.msk [vmem:[#allocation2 + $0x5c] sm:$0xf] %vm293, %v284
      %318 = vst.msk [vmem:[#allocation2 + $0x60] sm:$0xf] %vm293, %v285
      %319 = vst.msk [vmem:[#allocation2 + $0x64] sm:$0xf] %vm293, %v286
      %320 = vst.msk [vmem:[#allocation2 + $0x68] sm:$0xf] %vm293, %v287
      %321 = vst.msk [vmem:[#allocation2 + $0x6c] sm:$0xf] %vm293, %v288
      %322 = vst.msk [vmem:[#allocation2 + $0x70] sm:$0xf] %vm293, %v289
      %323 = vst.msk [vmem:[#allocation2 + $0x74] sm:$0xf] %vm293, %v290
      %324 = vst.msk [vmem:[#allocation2 + $0x78] sm:$0xf] %vm293, %v291
      %325 = vst.msk [vmem:[#allocation2 + $0x7c] sm:$0xf] %vm293, %v292
      %v326 = vld [vmem:[#allocation2] sm:$0xf]
      %v327 = vld [vmem:[#allocation2 + $0x4] sm:$0xf]
      %v328 = vld [vmem:[#allocation2 + $0x8] sm:$0xf]
      %v329 = vld [vmem:[#allocation2 + $0xc] sm:$0xf]
      %v330 = vld [vmem:[#allocation2 + $0x10] sm:$0xf]
      %v331 = vld [vmem:[#allocation2 + $0x14] sm:$0xf]
      %v332 = vld [vmem:[#allocation2 + $0x18] sm:$0xf]
      %v333 = vld [vmem:[#allocation2 + $0x1c] sm:$0xf]
      %v334 = vld [vmem:[#allocation2 + $0x20] sm:$0xf]
      %v335 = vld [vmem:[#allocation2 + $0x24] sm:$0xf]
      %v336 = vld [vmem:[#allocation2 + $0x28] sm:$0xf]
      %v337 = vld [vmem:[#allocation2 + $0x2c] sm:$0xf]
      %v338 = vld [vmem:[#allocation2 + $0x30] sm:$0xf]
      %v339 = vld [vmem:[#allocation2 + $0x34] sm:$0xf]
      %v340 = vld [vmem:[#allocation2 + $0x38] sm:$0xf]
      %v341 = vld [vmem:[#allocation2 + $0x3c] sm:$0xf]
      %v342 = vld [vmem:[#allocation2 + $0x40] sm:$0xf]
      %v343 = vld [vmem:[#allocation2 + $0x44] sm:$0xf]
      %v344 = vld [vmem:[#allocation2 + $0x48] sm:$0xf]
      %v345 = vld [vmem:[#allocation2 + $0x4c] sm:$0xf]
      %v346 = vld [vmem:[#allocation2 + $0x50] sm:$0xf]
      %v347 = vld [vmem:[#allocation2 + $0x54] sm:$0xf]
      %v348 = vld [vmem:[#allocation2 + $0x58] sm:$0xf]
      %v349 = vld [vmem:[#allocation2 + $0x5c] sm:$0xf]
      %v350 = vld [vmem:[#allocation2 + $0x60] sm:$0xf]
      %v351 = vld [vmem:[#allocation2 + $0x64] sm:$0xf]
      %v352 = vld [vmem:[#allocation2 + $0x68] sm:$0xf]
      %v353 = vld [vmem:[#allocation2 + $0x6c] sm:$0xf]
      %v354 = vld [vmem:[#allocation2 + $0x70] sm:$0xf]
      %v355 = vld [vmem:[#allocation2 + $0x74] sm:$0xf]
      %v356 = vld [vmem:[#allocation2 + $0x78] sm:$0xf]
      %v357 = vld [vmem:[#allocation2 + $0x7c] sm:$0xf]
      %v358 = vld [vmem:[%s1] sm:$0xff]
      %v359 = vld [vmem:[%s1 + $0x8] sm:$0xff]
      %v360 = vld [vmem:[%s1 + $0x10] sm:$0xff]
      %v361 = vld [vmem:[%s1 + $0x18] sm:$0xff]
      %v362 = vld [vmem:[%s1 + $0x20] sm:$0xff]
      %v363 = vld [vmem:[%s1 + $0x28] sm:$0xff]
      %v364 = vld [vmem:[%s1 + $0x30] sm:$0xff]
      %v365 = vld [vmem:[%s1 + $0x38] sm:$0xff]
      %v366 = vld [vmem:[%s1 + $0x40] sm:$0xff]
      %v367 = vld [vmem:[%s1 + $0x48] sm:$0xff]
      %v368 = vld [vmem:[%s1 + $0x50] sm:$0xff]
      %v369 = vld [vmem:[%s1 + $0x58] sm:$0xff]
      %v370 = vld [vmem:[%s1 + $0x60] sm:$0xff]
      %v371 = vld [vmem:[%s1 + $0x68] sm:$0xff]
      %v372 = vld [vmem:[%s1 + $0x70] sm:$0xff]
      %v373 = vld [vmem:[%s1 + $0x78] sm:$0xff]
      %v374 = vld [vmem:[%s2] sm:$0x3]
      %v376 = vperm.slane %v374, 0
      %v377 = vperm.slane %v374, 1
      %v412 = vunpack.c.l.b16 %v326
      %v413 = vunpack.c.l.b16 %v327
      %v414 = vunpack.c.l.b16 %v328
      %v415 = vunpack.c.l.b16 %v329
      %v416 = vunpack.c.l.b16 %v330
      %v417 = vunpack.c.l.b16 %v331
      %v418 = vunpack.c.l.b16 %v332
      %v419 = vunpack.c.l.b16 %v333
      %v420 = vunpack.c.l.b16 %v334
      %v421 = vunpack.c.l.b16 %v335
      %v422 = vunpack.c.l.b16 %v336
      %v423 = vunpack.c.l.b16 %v337
      %v424 = vunpack.c.l.b16 %v338
      %v425 = vunpack.c.l.b16 %v339
      %v426 = vunpack.c.l.b16 %v340
      %v427 = vunpack.c.l.b16 %v341
      %v428 = vunpack.c.l.b16 %v342
      %v429 = vunpack.c.l.b16 %v343
      %v430 = vunpack.c.l.b16 %v344
      %v431 = vunpack.c.l.b16 %v345
      %v432 = vunpack.c.l.b16 %v346
      %v433 = vunpack.c.l.b16 %v347
      %v434 = vunpack.c.l.b16 %v348
      %v435 = vunpack.c.l.b16 %v349
      %v436 = vunpack.c.l.b16 %v350
      %v437 = vunpack.c.l.b16 %v351
      %v438 = vunpack.c.l.b16 %v352
      %v439 = vunpack.c.l.b16 %v353
      %v440 = vunpack.c.l.b16 %v354
      %v441 = vunpack.c.l.b16 %v355
      %v442 = vunpack.c.l.b16 %v356
      %v443 = vunpack.c.l.b16 %v357
      %v444 = vpack.c.b16 %v413, %v412
      %v445 = vpack.c.b16 %v415, %v414
      %v446 = vpack.c.b16 %v417, %v416
      %v447 = vpack.c.b16 %v419, %v418
      %v448 = vpack.c.b16 %v421, %v420
      %v449 = vpack.c.b16 %v423, %v422
      %v450 = vpack.c.b16 %v425, %v424
      %v451 = vpack.c.b16 %v427, %v426
      %v452 = vpack.c.b16 %v429, %v428
      %v453 = vpack.c.b16 %v431, %v430
      %v454 = vpack.c.b16 %v433, %v432
      %v455 = vpack.c.b16 %v435, %v434
      %v456 = vpack.c.b16 %v437, %v436
      %v457 = vpack.c.b16 %v439, %v438
      %v458 = vpack.c.b16 %v441, %v440
      %v459 = vpack.c.b16 %v443, %v442
      %v492 = vunpack.c.l.b16 %v358
      %v493 = vunpack.c.h.b16 %v358
      %v494 = vunpack.c.l.b16 %v359
      %v495 = vunpack.c.h.b16 %v359
      %v496 = vunpack.c.l.b16 %v360
      %v497 = vunpack.c.h.b16 %v360
      %v498 = vunpack.c.l.b16 %v361
      %v499 = vunpack.c.h.b16 %v361
      %v500 = vunpack.c.l.b16 %v362
      %v501 = vunpack.c.h.b16 %v362
      %v502 = vunpack.c.l.b16 %v363
      %v503 = vunpack.c.h.b16 %v363
      %v504 = vunpack.c.l.b16 %v364
      %v505 = vunpack.c.h.b16 %v364
      %v506 = vunpack.c.l.b16 %v365
      %v507 = vunpack.c.h.b16 %v365
      %v508 = vunpack.c.l.b16 %v366
      %v509 = vunpack.c.h.b16 %v366
      %v510 = vunpack.c.l.b16 %v367
      %v511 = vunpack.c.h.b16 %v367
      %v512 = vunpack.c.l.b16 %v368
      %v513 = vunpack.c.h.b16 %v368
      %v514 = vunpack.c.l.b16 %v369
      %v515 = vunpack.c.h.b16 %v369
      %v516 = vunpack.c.l.b16 %v370
      %v517 = vunpack.c.h.b16 %v370
      %v518 = vunpack.c.l.b16 %v371
      %v519 = vunpack.c.h.b16 %v371
      %v520 = vunpack.c.l.b16 %v372
      %v521 = vunpack.c.h.b16 %v372
      %v522 = vunpack.c.l.b16 %v373
      %v523 = vunpack.c.h.b16 %v373
      %v524 = vpack.c.b16 %v494, %v492
      %v525 = vpack.c.b16 %v495, %v493
      %v526 = vpack.c.b16 %v498, %v496
      %v527 = vpack.c.b16 %v499, %v497
      %v528 = vpack.c.b16 %v502, %v500
      %v529 = vpack.c.b16 %v503, %v501
      %v530 = vpack.c.b16 %v506, %v504
      %v531 = vpack.c.b16 %v507, %v505
      %v532 = vpack.c.b16 %v510, %v508
      %v533 = vpack.c.b16 %v511, %v509
      %v534 = vpack.c.b16 %v514, %v512
      %v535 = vpack.c.b16 %v515, %v513
      %v536 = vpack.c.b16 %v518, %v516
      %v537 = vpack.c.b16 %v519, %v517
      %v538 = vpack.c.b16 %v522, %v520
      %v539 = vpack.c.b16 %v523, %v521
      %556 = vmatpush.bf16.msra.mxu0 %v538
      %557 = vmatpush.bf16.msra.mxu0 %v536
      %558 = vmatpush.bf16.msra.mxu0 %v534
      %559 = vmatpush.bf16.msra.mxu0 %v532
      %560 = vmatpush.bf16.msra.mxu0 %v530
      %561 = vmatpush.bf16.msra.mxu0 %v528
      %562 = vmatpush.bf16.msra.mxu0 %v526
      %563 = vmatpush.bf16.msra.mxu0 %v524
      %564 = vmatmul.bf16.gmra.mxu0 %v444
      %v565 = vpop.f32.mrf.mxu0
      %v566 = vadd.f32 %v376, %v565
      %v567 = vpop.f32.mrf.mxu0
      %v568 = vadd.f32 %v376, %v567
      %569 = vmatmul.bf16.gmra.mxu0 %v445
      %v570 = vpop.f32.mrf.mxu0
      %v571 = vadd.f32 %v376, %v570
      %v572 = vpop.f32.mrf.mxu0
      %v573 = vadd.f32 %v376, %v572
      %574 = vmatmul.bf16.gmra.mxu0 %v446
      %v575 = vpop.f32.mrf.mxu0
      %v576 = vadd.f32 %v376, %v575
      %v577 = vpop.f32.mrf.mxu0
      %v578 = vadd.f32 %v376, %v577
      %579 = vmatmul.bf16.gmra.mxu0 %v447
      %v580 = vpop.f32.mrf.mxu0
      %v581 = vadd.f32 %v376, %v580
      %v582 = vpop.f32.mrf.mxu0
      %v583 = vadd.f32 %v376, %v582
      %584 = vmatmul.bf16.gmra.mxu0 %v448
      %v585 = vpop.f32.mrf.mxu0
      %v586 = vadd.f32 %v376, %v585
      %v587 = vpop.f32.mrf.mxu0
      %v588 = vadd.f32 %v376, %v587
      %589 = vmatmul.bf16.gmra.mxu0 %v449
      %v590 = vpop.f32.mrf.mxu0
      %v591 = vadd.f32 %v376, %v590
      %v592 = vpop.f32.mrf.mxu0
      %v593 = vadd.f32 %v376, %v592
      %594 = vmatmul.bf16.gmra.mxu0 %v450
      %v595 = vpop.f32.mrf.mxu0
      %v596 = vadd.f32 %v376, %v595
      %v597 = vpop.f32.mrf.mxu0
      %v598 = vadd.f32 %v376, %v597
      %599 = vmatmul.bf16.gmra.mxu0 %v451
      %v600 = vpop.f32.mrf.mxu0
      %v601 = vadd.f32 %v376, %v600
      %v602 = vpop.f32.mrf.mxu0
      %v603 = vadd.f32 %v376, %v602
      %604 = vmatmul.bf16.gmra.mxu0 %v452
      %v605 = vpop.f32.mrf.mxu0
      %v606 = vadd.f32 %v376, %v605
      %v607 = vpop.f32.mrf.mxu0
      %v608 = vadd.f32 %v376, %v607
      %609 = vmatmul.bf16.gmra.mxu0 %v453
      %v610 = vpop.f32.mrf.mxu0
      %v611 = vadd.f32 %v376, %v610
      %v612 = vpop.f32.mrf.mxu0
      %v613 = vadd.f32 %v376, %v612
      %614 = vmatmul.bf16.gmra.mxu0 %v454
      %v615 = vpop.f32.mrf.mxu0
      %v616 = vadd.f32 %v376, %v615
      %v617 = vpop.f32.mrf.mxu0
      %v618 = vadd.f32 %v376, %v617
      %619 = vmatmul.bf16.gmra.mxu0 %v455
      %v620 = vpop.f32.mrf.mxu0
      %v621 = vadd.f32 %v376, %v620
      %v622 = vpop.f32.mrf.mxu0
      %v623 = vadd.f32 %v376, %v622
      %624 = vmatmul.bf16.gmra.mxu0 %v456
      %v625 = vpop.f32.mrf.mxu0
      %v626 = vadd.f32 %v376, %v625
      %v627 = vpop.f32.mrf.mxu0
      %v628 = vadd.f32 %v376, %v627
      %629 = vmatmul.bf16.gmra.mxu0 %v457
      %v630 = vpop.f32.mrf.mxu0
      %v631 = vadd.f32 %v376, %v630
      %v632 = vpop.f32.mrf.mxu0
      %v633 = vadd.f32 %v376, %v632
      %634 = vmatmul.bf16.gmra.mxu0 %v458
      %v635 = vpop.f32.mrf.mxu0
      %v636 = vadd.f32 %v376, %v635
      %v637 = vpop.f32.mrf.mxu0
      %v638 = vadd.f32 %v376, %v637
      %639 = vmatmul.bf16.gmra.mxu0 %v459
      %v640 = vpop.f32.mrf.mxu0
      %v641 = vadd.f32 %v376, %v640
      %v642 = vpop.f32.mrf.mxu0
      %v643 = vadd.f32 %v376, %v642
      %644 = vdwg.mxu0
      %645 = vmatpush.bf16.msra.mxu0 %v539
      %646 = vmatpush.bf16.msra.mxu0 %v537
      %647 = vmatpush.bf16.msra.mxu0 %v535
      %648 = vmatpush.bf16.msra.mxu0 %v533
      %649 = vmatpush.bf16.msra.mxu0 %v531
      %650 = vmatpush.bf16.msra.mxu0 %v529
      %651 = vmatpush.bf16.msra.mxu0 %v527
      %652 = vmatpush.bf16.msra.mxu0 %v525
      %653 = vmatmul.bf16.gmra.mxu0 %v444
      %v654 = vpop.f32.mrf.mxu0
      %v655 = vadd.f32 %v377, %v654
      %v656 = vpop.f32.mrf.mxu0
      %v657 = vadd.f32 %v377, %v656
      %658 = vmatmul.bf16.gmra.mxu0 %v445
      %v659 = vpop.f32.mrf.mxu0
      %v660 = vadd.f32 %v377, %v659
      %v661 = vpop.f32.mrf.mxu0
      %v662 = vadd.f32 %v377, %v661
      %663 = vmatmul.bf16.gmra.mxu0 %v446
      %v664 = vpop.f32.mrf.mxu0
      %v665 = vadd.f32 %v377, %v664
      %v666 = vpop.f32.mrf.mxu0
      %v667 = vadd.f32 %v377, %v666
      %668 = vmatmul.bf16.gmra.mxu0 %v447
      %v669 = vpop.f32.mrf.mxu0
      %v670 = vadd.f32 %v377, %v669
      %v671 = vpop.f32.mrf.mxu0
      %v672 = vadd.f32 %v377, %v671
      %673 = vmatmul.bf16.gmra.mxu0 %v448
      %v674 = vpop.f32.mrf.mxu0
      %v675 = vadd.f32 %v377, %v674
      %v676 = vpop.f32.mrf.mxu0
      %v677 = vadd.f32 %v377, %v676
      %678 = vmatmul.bf16.gmra.mxu0 %v449
      %v679 = vpop.f32.mrf.mxu0
      %v680 = vadd.f32 %v377, %v679
      %v681 = vpop.f32.mrf.mxu0
      %v682 = vadd.f32 %v377, %v681
      %683 = vmatmul.bf16.gmra.mxu0 %v450
      %v684 = vpop.f32.mrf.mxu0
      %v685 = vadd.f32 %v377, %v684
      %v686 = vpop.f32.mrf.mxu0
      %v687 = vadd.f32 %v377, %v686
      %688 = vmatmul.bf16.gmra.mxu0 %v451
      %v689 = vpop.f32.mrf.mxu0
      %v690 = vadd.f32 %v377, %v689
      %v691 = vpop.f32.mrf.mxu0
      %v692 = vadd.f32 %v377, %v691
      %693 = vmatmul.bf16.gmra.mxu0 %v452
      %v694 = vpop.f32.mrf.mxu0
      %v695 = vadd.f32 %v377, %v694
      %v696 = vpop.f32.mrf.mxu0
      %v697 = vadd.f32 %v377, %v696
      %698 = vmatmul.bf16.gmra.mxu0 %v453
      %v699 = vpop.f32.mrf.mxu0
      %v700 = vadd.f32 %v377, %v699
      %v701 = vpop.f32.mrf.mxu0
      %v702 = vadd.f32 %v377, %v701
      %703 = vmatmul.bf16.gmra.mxu0 %v454
      %v704 = vpop.f32.mrf.mxu0
      %v705 = vadd.f32 %v377, %v704
      %v706 = vpop.f32.mrf.mxu0
      %v707 = vadd.f32 %v377, %v706
      %708 = vmatmul.bf16.gmra.mxu0 %v455
      %v709 = vpop.f32.mrf.mxu0
      %v710 = vadd.f32 %v377, %v709
      %v711 = vpop.f32.mrf.mxu0
      %v712 = vadd.f32 %v377, %v711
      %713 = vmatmul.bf16.gmra.mxu0 %v456
      %v714 = vpop.f32.mrf.mxu0
      %v715 = vadd.f32 %v377, %v714
      %v716 = vpop.f32.mrf.mxu0
      %v717 = vadd.f32 %v377, %v716
      %718 = vmatmul.bf16.gmra.mxu0 %v457
      %v719 = vpop.f32.mrf.mxu0
      %v720 = vadd.f32 %v377, %v719
      %v721 = vpop.f32.mrf.mxu0
      %v722 = vadd.f32 %v377, %v721
      %723 = vmatmul.bf16.gmra.mxu0 %v458
      %v724 = vpop.f32.mrf.mxu0
      %v725 = vadd.f32 %v377, %v724
      %v726 = vpop.f32.mrf.mxu0
      %v727 = vadd.f32 %v377, %v726
      %728 = vmatmul.bf16.gmra.mxu0 %v459
      %v729 = vpop.f32.mrf.mxu0
      %v730 = vadd.f32 %v377, %v729
      %v731 = vpop.f32.mrf.mxu0
      %v732 = vadd.f32 %v377, %v731
      %733 = vdwg.mxu0
      %v734 = vmax.f32 %v566, 0.0
      %v735 = vmax.f32 %v655, 0.0
      %v736 = vmax.f32 %v568, 0.0
      %v737 = vmax.f32 %v657, 0.0
      %v738 = vmax.f32 %v571, 0.0
      %v739 = vmax.f32 %v660, 0.0
      %v740 = vmax.f32 %v573, 0.0
      %v741 = vmax.f32 %v662, 0.0
      %v742 = vmax.f32 %v576, 0.0
      %v743 = vmax.f32 %v665, 0.0
      %v744 = vmax.f32 %v578, 0.0
      %v745 = vmax.f32 %v667, 0.0
      %v746 = vmax.f32 %v581, 0.0
      %v747 = vmax.f32 %v670, 0.0
      %v748 = vmax.f32 %v583, 0.0
      %v749 = vmax.f32 %v672, 0.0
      %v750 = vmax.f32 %v586, 0.0
      %v751 = vmax.f32 %v675, 0.0
      %v752 = vmax.f32 %v588, 0.0
      %v753 = vmax.f32 %v677, 0.0
      %v754 = vmax.f32 %v591, 0.0
      %v755 = vmax.f32 %v680, 0.0
      %v756 = vmax.f32 %v593, 0.0
      %v757 = vmax.f32 %v682, 0.0
      %v758 = vmax.f32 %v596, 0.0
      %v759 = vmax.f32 %v685, 0.0
      %v760 = vmax.f32 %v598, 0.0
      %v761 = vmax.f32 %v687, 0.0
      %v762 = vmax.f32 %v601, 0.0
      %v763 = vmax.f32 %v690, 0.0
      %v764 = vmax.f32 %v603, 0.0
      %v765 = vmax.f32 %v692, 0.0
      %v766 = vmax.f32 %v606, 0.0
      %v767 = vmax.f32 %v695, 0.0
      %v768 = vmax.f32 %v608, 0.0
      %v769 = vmax.f32 %v697, 0.0
      %v770 = vmax.f32 %v611, 0.0
      %v771 = vmax.f32 %v700, 0.0
      %v772 = vmax.f32 %v613, 0.0
      %v773 = vmax.f32 %v702, 0.0
      %v774 = vmax.f32 %v616, 0.0
      %v775 = vmax.f32 %v705, 0.0
      %v776 = vmax.f32 %v618, 0.0
      %v777 = vmax.f32 %v707, 0.0
      %v778 = vmax.f32 %v621, 0.0
      %v779 = vmax.f32 %v710, 0.0
      %v780 = vmax.f32 %v623, 0.0
      %v781 = vmax.f32 %v712, 0.0
      %v782 = vmax.f32 %v626, 0.0
      %v783 = vmax.f32 %v715, 0.0
      %v784 = vmax.f32 %v628, 0.0
      %v785 = vmax.f32 %v717, 0.0
      %v786 = vmax.f32 %v631, 0.0
      %v787 = vmax.f32 %v720, 0.0
      %v788 = vmax.f32 %v633, 0.0
      %v789 = vmax.f32 %v722, 0.0
      %v790 = vmax.f32 %v636, 0.0
      %v791 = vmax.f32 %v725, 0.0
      %v792 = vmax.f32 %v638, 0.0
      %v793 = vmax.f32 %v727, 0.0
      %v794 = vmax.f32 %v641, 0.0
      %v795 = vmax.f32 %v730, 0.0
      %v796 = vmax.f32 %v643, 0.0
      %v797 = vmax.f32 %v732, 0.0
      %v798 = vpack.c.bf16 %v736, %v734
      %v799 = vpack.c.bf16 %v737, %v735
      %v800 = vpack.c.bf16 %v740, %v738
      %v801 = vpack.c.bf16 %v741, %v739
      %v802 = vpack.c.bf16 %v744, %v742
      %v803 = vpack.c.bf16 %v745, %v743
      %v804 = vpack.c.bf16 %v748, %v746
      %v805 = vpack.c.bf16 %v749, %v747
      %v806 = vpack.c.bf16 %v752, %v750
      %v807 = vpack.c.bf16 %v753, %v751
      %v808 = vpack.c.bf16 %v756, %v754
      %v809 = vpack.c.bf16 %v757, %v755
      %v810 = vpack.c.bf16 %v760, %v758
      %v811 = vpack.c.bf16 %v761, %v759
      %v812 = vpack.c.bf16 %v764, %v762
      %v813 = vpack.c.bf16 %v765, %v763
      %v814 = vpack.c.bf16 %v768, %v766
      %v815 = vpack.c.bf16 %v769, %v767
      %v816 = vpack.c.bf16 %v772, %v770
      %v817 = vpack.c.bf16 %v773, %v771
      %v818 = vpack.c.bf16 %v776, %v774
      %v819 = vpack.c.bf16 %v777, %v775
      %v820 = vpack.c.bf16 %v780, %v778
      %v821 = vpack.c.bf16 %v781, %v779
      %v822 = vpack.c.bf16 %v784, %v782
      %v823 = vpack.c.bf16 %v785, %v783
      %v824 = vpack.c.bf16 %v788, %v786
      %v825 = vpack.c.bf16 %v789, %v787
      %v826 = vpack.c.bf16 %v792, %v790
      %v827 = vpack.c.bf16 %v793, %v791
      %v828 = vpack.c.bf16 %v796, %v794
      %v829 = vpack.c.bf16 %v797, %v795
      %v830 = vld [vmem:[%s3] sm:$0xf]
      %v831 = vld [vmem:[%s3 + $0x4] sm:$0xf]
      %v832 = vld [vmem:[%s3 + $0x8] sm:$0xf]
      %v833 = vld [vmem:[%s3 + $0xc] sm:$0xf]
      %v834 = vld [vmem:[%s3 + $0x10] sm:$0xf]
      %v835 = vld [vmem:[%s3 + $0x14] sm:$0xf]
      %v836 = vld [vmem:[%s3 + $0x18] sm:$0xf]
      %v837 = vld [vmem:[%s3 + $0x1c] sm:$0xf]
      %v838 = vld [vmem:[%s3 + $0x20] sm:$0xf]
      %v839 = vld [vmem:[%s3 + $0x24] sm:$0xf]
      %v840 = vld [vmem:[%s3 + $0x28] sm:$0xf]
      %v841 = vld [vmem:[%s3 + $0x2c] sm:$0xf]
      %v842 = vld [vmem:[%s3 + $0x30] sm:$0xf]
      %v843 = vld [vmem:[%s3 + $0x34] sm:$0xf]
      %v844 = vld [vmem:[%s3 + $0x38] sm:$0xf]
      %v845 = vld [vmem:[%s3 + $0x3c] sm:$0xf]
      %v846 = vld [vmem:[%s3 + $0x40] sm:$0xf]
      %v847 = vld [vmem:[%s3 + $0x44] sm:$0xf]
      %v848 = vld [vmem:[%s3 + $0x48] sm:$0xf]
      %v849 = vld [vmem:[%s3 + $0x4c] sm:$0xf]
      %v850 = vld [vmem:[%s3 + $0x50] sm:$0xf]
      %v851 = vld [vmem:[%s3 + $0x54] sm:$0xf]
      %v852 = vld [vmem:[%s3 + $0x58] sm:$0xf]
      %v853 = vld [vmem:[%s3 + $0x5c] sm:$0xf]
      %v854 = vld [vmem:[%s3 + $0x60] sm:$0xf]
      %v855 = vld [vmem:[%s3 + $0x64] sm:$0xf]
      %v856 = vld [vmem:[%s3 + $0x68] sm:$0xf]
      %v857 = vld [vmem:[%s3 + $0x6c] sm:$0xf]
      %v858 = vld [vmem:[%s3 + $0x70] sm:$0xf]
      %v859 = vld [vmem:[%s3 + $0x74] sm:$0xf]
      %v860 = vld [vmem:[%s3 + $0x78] sm:$0xf]
      %v861 = vld [vmem:[%s3 + $0x7c] sm:$0xf]
      %v894 = vunpack.c.l.b16 %v830
      %v895 = vunpack.c.l.b16 %v831
      %v896 = vunpack.c.l.b16 %v832
      %v897 = vunpack.c.l.b16 %v833
      %v898 = vunpack.c.l.b16 %v834
      %v899 = vunpack.c.l.b16 %v835
      %v900 = vunpack.c.l.b16 %v836
      %v901 = vunpack.c.l.b16 %v837
      %v902 = vunpack.c.l.b16 %v838
      %v903 = vunpack.c.l.b16 %v839
      %v904 = vunpack.c.l.b16 %v840
      %v905 = vunpack.c.l.b16 %v841
      %v906 = vunpack.c.l.b16 %v842
      %v907 = vunpack.c.l.b16 %v843
      %v908 = vunpack.c.l.b16 %v844
      %v909 = vunpack.c.l.b16 %v845
      %v910 = vunpack.c.l.b16 %v846
      %v911 = vunpack.c.l.b16 %v847
      %v912 = vunpack.c.l.b16 %v848
      %v913 = vunpack.c.l.b16 %v849
      %v914 = vunpack.c.l.b16 %v850
      %v915 = vunpack.c.l.b16 %v851
      %v916 = vunpack.c.l.b16 %v852
      %v917 = vunpack.c.l.b16 %v853
      %v918 = vunpack.c.l.b16 %v854
      %v919 = vunpack.c.l.b16 %v855
      %v920 = vunpack.c.l.b16 %v856
      %v921 = vunpack.c.l.b16 %v857
      %v922 = vunpack.c.l.b16 %v858
      %v923 = vunpack.c.l.b16 %v859
      %v924 = vunpack.c.l.b16 %v860
      %v925 = vunpack.c.l.b16 %v861
      %v926 = vpack.c.b16 %v895, %v894
      %v927 = vpack.c.b16 %v897, %v896
      %v928 = vpack.c.b16 %v899, %v898
      %v929 = vpack.c.b16 %v901, %v900
      %v930 = vpack.c.b16 %v903, %v902
      %v931 = vpack.c.b16 %v905, %v904
      %v932 = vpack.c.b16 %v907, %v906
      %v933 = vpack.c.b16 %v909, %v908
      %v934 = vpack.c.b16 %v911, %v910
      %v935 = vpack.c.b16 %v913, %v912
      %v936 = vpack.c.b16 %v915, %v914
      %v937 = vpack.c.b16 %v917, %v916
      %v938 = vpack.c.b16 %v919, %v918
      %v939 = vpack.c.b16 %v921, %v920
      %v940 = vpack.c.b16 %v923, %v922
      %v941 = vpack.c.b16 %v925, %v924
      %958 = vmatpush.bf16.msra.mxu0 %v933
      %959 = vmatpush.bf16.msra.mxu0 %v932
      %960 = vmatpush.bf16.msra.mxu0 %v931
      %961 = vmatpush.bf16.msra.mxu0 %v930
      %962 = vmatpush.bf16.msra.mxu0 %v929
      %963 = vmatpush.bf16.msra.mxu0 %v928
      %964 = vmatpush.bf16.msra.mxu0 %v927
      %965 = vmatpush.bf16.msra.mxu0 %v926
      %966 = vmatmul.bf16.gmra.mxu0 %v798
      %v967 = vpop.f32.mrf.mxu0
      %v968 = vadd.f32 0.0, %v967
      %v969 = vpop.f32.mrf.mxu0
      %v970 = vadd.f32 0.0, %v969
      %971 = vmatmul.bf16.gmra.mxu0 %v800
      %v972 = vpop.f32.mrf.mxu0
      %v973 = vadd.f32 0.0, %v972
      %v974 = vpop.f32.mrf.mxu0
      %v975 = vadd.f32 0.0, %v974
      %976 = vmatmul.bf16.gmra.mxu0 %v802
      %v977 = vpop.f32.mrf.mxu0
      %v978 = vadd.f32 0.0, %v977
      %v979 = vpop.f32.mrf.mxu0
      %v980 = vadd.f32 0.0, %v979
      %981 = vmatmul.bf16.gmra.mxu0 %v804
      %v982 = vpop.f32.mrf.mxu0
      %v983 = vadd.f32 0.0, %v982
      %v984 = vpop.f32.mrf.mxu0
      %v985 = vadd.f32 0.0, %v984
      %986 = vmatmul.bf16.gmra.mxu0 %v806
      %v987 = vpop.f32.mrf.mxu0
      %v988 = vadd.f32 0.0, %v987
      %v989 = vpop.f32.mrf.mxu0
      %v990 = vadd.f32 0.0, %v989
      %991 = vmatmul.bf16.gmra.mxu0 %v808
      %v992 = vpop.f32.mrf.mxu0
      %v993 = vadd.f32 0.0, %v992
      %v994 = vpop.f32.mrf.mxu0
      %v995 = vadd.f32 0.0, %v994
      %996 = vmatmul.bf16.gmra.mxu0 %v810
      %v997 = vpop.f32.mrf.mxu0
      %v998 = vadd.f32 0.0, %v997
      %v999 = vpop.f32.mrf.mxu0
      %v1000 = vadd.f32 0.0, %v999
      %1001 = vmatmul.bf16.gmra.mxu0 %v812
      %v1002 = vpop.f32.mrf.mxu0
      %v1003 = vadd.f32 0.0, %v1002
      %v1004 = vpop.f32.mrf.mxu0
      %v1005 = vadd.f32 0.0, %v1004
      %1006 = vmatmul.bf16.gmra.mxu0 %v814
      %v1007 = vpop.f32.mrf.mxu0
      %v1008 = vadd.f32 0.0, %v1007
      %v1009 = vpop.f32.mrf.mxu0
      %v1010 = vadd.f32 0.0, %v1009
      %1011 = vmatmul.bf16.gmra.mxu0 %v816
      %v1012 = vpop.f32.mrf.mxu0
      %v1013 = vadd.f32 0.0, %v1012
      %v1014 = vpop.f32.mrf.mxu0
      %v1015 = vadd.f32 0.0, %v1014
      %1016 = vmatmul.bf16.gmra.mxu0 %v818
      %v1017 = vpop.f32.mrf.mxu0
      %v1018 = vadd.f32 0.0, %v1017
      %v1019 = vpop.f32.mrf.mxu0
      %v1020 = vadd.f32 0.0, %v1019
      %1021 = vmatmul.bf16.gmra.mxu0 %v820
      %v1022 = vpop.f32.mrf.mxu0
      %v1023 = vadd.f32 0.0, %v1022
      %v1024 = vpop.f32.mrf.mxu0
      %v1025 = vadd.f32 0.0, %v1024
      %1026 = vmatmul.bf16.gmra.mxu0 %v822
      %v1027 = vpop.f32.mrf.mxu0
      %v1028 = vadd.f32 0.0, %v1027
      %v1029 = vpop.f32.mrf.mxu0
      %v1030 = vadd.f32 0.0, %v1029
      %1031 = vmatmul.bf16.gmra.mxu0 %v824
      %v1032 = vpop.f32.mrf.mxu0
      %v1033 = vadd.f32 0.0, %v1032
      %v1034 = vpop.f32.mrf.mxu0
      %v1035 = vadd.f32 0.0, %v1034
      %1036 = vmatmul.bf16.gmra.mxu0 %v826
      %v1037 = vpop.f32.mrf.mxu0
      %v1038 = vadd.f32 0.0, %v1037
      %v1039 = vpop.f32.mrf.mxu0
      %v1040 = vadd.f32 0.0, %v1039
      %1041 = vmatmul.bf16.gmra.mxu0 %v828
      %v1042 = vpop.f32.mrf.mxu0
      %v1043 = vadd.f32 0.0, %v1042
      %v1044 = vpop.f32.mrf.mxu0
      %v1045 = vadd.f32 0.0, %v1044
      %1046 = vdwg.mxu0
      %1047 = vmatpush.bf16.msra.mxu0 %v941
      %1048 = vmatpush.bf16.msra.mxu0 %v940
      %1049 = vmatpush.bf16.msra.mxu0 %v939
      %1050 = vmatpush.bf16.msra.mxu0 %v938
      %1051 = vmatpush.bf16.msra.mxu0 %v937
      %1052 = vmatpush.bf16.msra.mxu0 %v936
      %1053 = vmatpush.bf16.msra.mxu0 %v935
      %1054 = vmatpush.bf16.msra.mxu0 %v934
      %1055 = vmatmul.bf16.gmra.mxu0 %v799
      %v1056 = vpop.f32.mrf.mxu0
      %v1057 = vadd.f32 %v968, %v1056
      %v1058 = vpop.f32.mrf.mxu0
      %v1059 = vadd.f32 %v970, %v1058
      %1060 = vmatmul.bf16.gmra.mxu0 %v801
      %v1061 = vpop.f32.mrf.mxu0
      %v1062 = vadd.f32 %v973, %v1061
      %v1063 = vpop.f32.mrf.mxu0
      %v1064 = vadd.f32 %v975, %v1063
      %1065 = vmatmul.bf16.gmra.mxu0 %v803
      %v1066 = vpop.f32.mrf.mxu0
      %v1067 = vadd.f32 %v978, %v1066
      %v1068 = vpop.f32.mrf.mxu0
      %v1069 = vadd.f32 %v980, %v1068
      %1070 = vmatmul.bf16.gmra.mxu0 %v805
      %v1071 = vpop.f32.mrf.mxu0
      %v1072 = vadd.f32 %v983, %v1071
      %v1073 = vpop.f32.mrf.mxu0
      %v1074 = vadd.f32 %v985, %v1073
      %1075 = vmatmul.bf16.gmra.mxu0 %v807
      %v1076 = vpop.f32.mrf.mxu0
      %v1077 = vadd.f32 %v988, %v1076
      %v1078 = vpop.f32.mrf.mxu0
      %v1079 = vadd.f32 %v990, %v1078
      %1080 = vmatmul.bf16.gmra.mxu0 %v809
      %v1081 = vpop.f32.mrf.mxu0
      %v1082 = vadd.f32 %v993, %v1081
      %v1083 = vpop.f32.mrf.mxu0
      %v1084 = vadd.f32 %v995, %v1083
      %1085 = vmatmul.bf16.gmra.mxu0 %v811
      %v1086 = vpop.f32.mrf.mxu0
      %v1087 = vadd.f32 %v998, %v1086
      %v1088 = vpop.f32.mrf.mxu0
      %v1089 = vadd.f32 %v1000, %v1088
      %1090 = vmatmul.bf16.gmra.mxu0 %v813
      %v1091 = vpop.f32.mrf.mxu0
      %v1092 = vadd.f32 %v1003, %v1091
      %v1093 = vpop.f32.mrf.mxu0
      %v1094 = vadd.f32 %v1005, %v1093
      %1095 = vmatmul.bf16.gmra.mxu0 %v815
      %v1096 = vpop.f32.mrf.mxu0
      %v1097 = vadd.f32 %v1008, %v1096
      %v1098 = vpop.f32.mrf.mxu0
      %v1099 = vadd.f32 %v1010, %v1098
      %1100 = vmatmul.bf16.gmra.mxu0 %v817
      %v1101 = vpop.f32.mrf.mxu0
      %v1102 = vadd.f32 %v1013, %v1101
      %v1103 = vpop.f32.mrf.mxu0
      %v1104 = vadd.f32 %v1015, %v1103
      %1105 = vmatmul.bf16.gmra.mxu0 %v819
      %v1106 = vpop.f32.mrf.mxu0
      %v1107 = vadd.f32 %v1018, %v1106
      %v1108 = vpop.f32.mrf.mxu0
      %v1109 = vadd.f32 %v1020, %v1108
      %1110 = vmatmul.bf16.gmra.mxu0 %v821
      %v1111 = vpop.f32.mrf.mxu0
      %v1112 = vadd.f32 %v1023, %v1111
      %v1113 = vpop.f32.mrf.mxu0
      %v1114 = vadd.f32 %v1025, %v1113
      %1115 = vmatmul.bf16.gmra.mxu0 %v823
      %v1116 = vpop.f32.mrf.mxu0
      %v1117 = vadd.f32 %v1028, %v1116
      %v1118 = vpop.f32.mrf.mxu0
      %v1119 = vadd.f32 %v1030, %v1118
      %1120 = vmatmul.bf16.gmra.mxu0 %v825
      %v1121 = vpop.f32.mrf.mxu0
      %v1122 = vadd.f32 %v1033, %v1121
      %v1123 = vpop.f32.mrf.mxu0
      %v1124 = vadd.f32 %v1035, %v1123
      %1125 = vmatmul.bf16.gmra.mxu0 %v827
      %v1126 = vpop.f32.mrf.mxu0
      %v1127 = vadd.f32 %v1038, %v1126
      %v1128 = vpop.f32.mrf.mxu0
      %v1129 = vadd.f32 %v1040, %v1128
      %1130 = vmatmul.bf16.gmra.mxu0 %v829
      %v1131 = vpop.f32.mrf.mxu0
      %v1132 = vadd.f32 %v1043, %v1131
      %v1133 = vpop.f32.mrf.mxu0
      %v1134 = vadd.f32 %v1045, %v1133
      %1135 = vdwg.mxu0
      %v1136 = vld [vmem:[%s4] sm:$0x1]
      %v1138 = vperm.slane %v1136, 0
      %v1140 = vadd.f32 %v1057, %v1138
      %v1141 = vadd.f32 %v1059, %v1138
      %v1142 = vadd.f32 %v1062, %v1138
      %v1143 = vadd.f32 %v1064, %v1138
      %v1144 = vadd.f32 %v1067, %v1138
      %v1145 = vadd.f32 %v1069, %v1138
      %v1146 = vadd.f32 %v1072, %v1138
      %v1147 = vadd.f32 %v1074, %v1138
      %v1148 = vadd.f32 %v1077, %v1138
      %v1149 = vadd.f32 %v1079, %v1138
      %v1150 = vadd.f32 %v1082, %v1138
      %v1151 = vadd.f32 %v1084, %v1138
      %v1152 = vadd.f32 %v1087, %v1138
      %v1153 = vadd.f32 %v1089, %v1138
      %v1154 = vadd.f32 %v1092, %v1138
      %v1155 = vadd.f32 %v1094, %v1138
      %v1156 = vadd.f32 %v1097, %v1138
      %v1157 = vadd.f32 %v1099, %v1138
      %v1158 = vadd.f32 %v1102, %v1138
      %v1159 = vadd.f32 %v1104, %v1138
      %v1160 = vadd.f32 %v1107, %v1138
      %v1161 = vadd.f32 %v1109, %v1138
      %v1162 = vadd.f32 %v1112, %v1138
      %v1163 = vadd.f32 %v1114, %v1138
      %v1164 = vadd.f32 %v1117, %v1138
      %v1165 = vadd.f32 %v1119, %v1138
      %v1166 = vadd.f32 %v1122, %v1138
      %v1167 = vadd.f32 %v1124, %v1138
      %v1168 = vadd.f32 %v1127, %v1138
      %v1169 = vadd.f32 %v1129, %v1138
      %v1170 = vadd.f32 %v1132, %v1138
      %v1171 = vadd.f32 %v1134, %v1138
      %vm1172 = vcmask 64512
      %1173 = vst.msk [vmem:[%s226] sm:$0xff] %vm1172, %v1140
      %1174 = vst.msk [vmem:[%s226 + $0x8] sm:$0xff] %vm1172, %v1141
      %1175 = vst.msk [vmem:[%s226 + $0x10] sm:$0xff] %vm1172, %v1142
      %1176 = vst.msk [vmem:[%s226 + $0x18] sm:$0xff] %vm1172, %v1143
      %1177 = vst.msk [vmem:[%s226 + $0x20] sm:$0xff] %vm1172, %v1144
      %1178 = vst.msk [vmem:[%s226 + $0x28] sm:$0xff] %vm1172, %v1145
      %1179 = vst.msk [vmem:[%s226 + $0x30] sm:$0xff] %vm1172, %v1146
      %1180 = vst.msk [vmem:[%s226 + $0x38] sm:$0xff] %vm1172, %v1147
      %1181 = vst.msk [vmem:[%s226 + $0x40] sm:$0xff] %vm1172, %v1148
      %1182 = vst.msk [vmem:[%s226 + $0x48] sm:$0xff] %vm1172, %v1149
      %1183 = vst.msk [vmem:[%s226 + $0x50] sm:$0xff] %vm1172, %v1150
      %1184 = vst.msk [vmem:[%s226 + $0x58] sm:$0xff] %vm1172, %v1151
      %1185 = vst.msk [vmem:[%s226 + $0x60] sm:$0xff] %vm1172, %v1152
      %1186 = vst.msk [vmem:[%s226 + $0x68] sm:$0xff] %vm1172, %v1153
      %1187 = vst.msk [vmem:[%s226 + $0x70] sm:$0xff] %vm1172, %v1154
      %1188 = vst.msk [vmem:[%s226 + $0x78] sm:$0xff] %vm1172, %v1155
      %1189 = vst.msk [vmem:[%s226 + $0x80] sm:$0xff] %vm1172, %v1156
      %1190 = vst.msk [vmem:[%s226 + $0x88] sm:$0xff] %vm1172, %v1157
      %1191 = vst.msk [vmem:[%s226 + $0x90] sm:$0xff] %vm1172, %v1158
      %1192 = vst.msk [vmem:[%s226 + $0x98] sm:$0xff] %vm1172, %v1159
      %1193 = vst.msk [vmem:[%s226 + $0xa0] sm:$0xff] %vm1172, %v1160
      %1194 = vst.msk [vmem:[%s226 + $0xa8] sm:$0xff] %vm1172, %v1161
      %1195 = vst.msk [vmem:[%s226 + $0xb0] sm:$0xff] %vm1172, %v1162
      %1196 = vst.msk [vmem:[%s226 + $0xb8] sm:$0xff] %vm1172, %v1163
      %1197 = vst.msk [vmem:[%s226 + $0xc0] sm:$0xff] %vm1172, %v1164
      %1198 = vst.msk [vmem:[%s226 + $0xc8] sm:$0xff] %vm1172, %v1165
      %1199 = vst.msk [vmem:[%s226 + $0xd0] sm:$0xff] %vm1172, %v1166
      %1200 = vst.msk [vmem:[%s226 + $0xd8] sm:$0xff] %vm1172, %v1167
      %1201 = vst.msk [vmem:[%s226 + $0xe0] sm:$0xff] %vm1172, %v1168
      %1202 = vst.msk [vmem:[%s226 + $0xe8] sm:$0xff] %vm1172, %v1169
      %1203 = vst.msk [vmem:[%s226 + $0xf0] sm:$0xff] %vm1172, %v1170
      %1204 = vst.msk [vmem:[%s226 + $0xf8] sm:$0xff] %vm1172, %v1171
      %s1205 = smul.u32 32, %s16
      %p1206 = scmp.lt.s32.totalorder %s1205, 63
      %s1207 = scalar_select %p1206, %s1205, 63
      %s1208 = smul.addr %s1207, 8
      %s1209 = scalar_lea.vmem %s5, %s1208
      // Predicated region
      $region41: #{tpu_custom_call.1} parent=39 // pred_check
        %p1210 = pneg %p144
      $region42: #{tpu_custom_call.1} parent=39 // pred_check_branch
        %1212 = sbr.rel (%p1210) target = $region44
      $region43: #{tpu_custom_call.1} parent=39 // pred_region
        %s1213 = smul.u32 32, %s16
      $region44: #{tpu_custom_call.1} parent=39 // pred_fallthru
        _
    $region40: #{tpu_custom_call.1} parent=5 // pred_fallthru
      _
    %p1214 = scmp.le.s32.totalorder 2, %s11
    // Predicated region
    $region45: #{tpu_custom_call.1} parent=5 // pred_check
      %p1215 = pneg %p1214
    $region46: #{tpu_custom_call.1} parent=5 // pred_check_branch
      %1217 = sbr.rel (%p1215) target = $region48
    $region47: #{tpu_custom_call.1} parent=5 // pred_region
      %s1218 = ssub.s32 %s11, 2
      // Predicated region
      $region49: #{tpu_custom_call.1} parent=47 // pred_check
        %p1219 = pneg %p150
      $region50: #{tpu_custom_call.1} parent=47 // pred_check_branch
        %1221 = sbr.rel (%p1219) target = $region52
      $region51: #{tpu_custom_call.1} parent=47 // pred_region
        %s1222 = smul.u32 32, %s17
        %p1223 = scmp.lt.s32.totalorder %s1222, 63
        %s1224 = scalar_select %p1223, %s1222, 63
        %s1225 = smul.addr %s1224, 8
        %s1226 = scalar_lea.vmem %s5, %s1225
      $region52: #{tpu_custom_call.1} parent=47 // pred_fallthru
        _
    $region48: #{tpu_custom_call.1} parent=5 // pred_fallthru
      _
  $region6: #{tpu_custom_call.1} parent=0 // loop_footer
    %s15 = sadd.s32 1, %s11
  $region7: #{tpu_custom_call.1} parent=0 // loop_footer_branch
    %10 = sbr.rel target = $region3
  $region8: #{tpu_custom_call.1} parent=0 // loop_exit
    _

</llo_original>
